<compile_context>
chip_gen: v7x
topology: tpu7x:2x2x1
jax: 0.10.0
libtpu: 0.0.40
codegen_flags: <defaults>
</compile_context>

<pallas_src>
import jax
import jax.numpy as jnp
from jax.experimental import pallas as pl
from jax.experimental.pallas import tpu as pltpu


# --------------------------------------------------------------------------
# Pallas kernel: one (tM, tV) logits tile + online logsumexp over the V axis
# --------------------------------------------------------------------------
def _lm_head_log_softmax_kernel(x_ref, w_ref, b_ref, out_ref, m_ref, l_ref):
    j = pl.program_id(1)
    n_v = pl.num_programs(1)
    t_v = w_ref.shape[1]

    @pl.when(j == 0)
    def _init():
        m_ref[...] = jnp.full(m_ref.shape, -jnp.inf, m_ref.dtype)
        l_ref[...] = jnp.zeros(l_ref.shape, l_ref.dtype)

    # (tM, tV) logits tile; bf16 operands, f32 MXU accumulation.
    s = jnp.dot(x_ref[...], w_ref[...], preferred_element_type=jnp.float32)
    s = s + b_ref[...].astype(jnp.float32)          # (1, tV) broadcast over rows

    # Online max / sum-exp update (all f32; exp goes to the EUP slot, the
    # cross-lane max/sum reductions go to the XLU slot -> off the VALU path).
    m_prev = m_ref[...]
    m_new = jnp.maximum(m_prev, jnp.max(s, axis=-1, keepdims=True))
    l_ref[...] = l_ref[...] * jnp.exp(m_prev - m_new) + jnp.sum(
        jnp.exp(s - m_new), axis=-1, keepdims=True)
    m_ref[...] = m_new

    # Stash unnormalized logits into the resident (tM, V) output block
    # (lane-dense, 128-aligned column slice -> unmasked vst).
    col = pl.multiple_of(j * t_v, 128)
    out_ref[:, pl.ds(col, t_v)] = s

    # Normalize the whole row slab once the last vocab tile has been seen; the
    # block is only written back to HBM after this final grid step.
    @pl.when(j == n_v - 1)
    def _finalize():
        out_ref[...] = out_ref[...] - (m_ref[...] + jnp.log(l_ref[...]))


def _round_up(x: int, m: int) -> int:
    return (x + m - 1) // m * m


def lm_head_log_probs(x, w, b, *, tm: int = 128, tv: int = 512):
    """log_softmax(x @ w + b, axis=-1) as a single-pass Pallas TPU kernel.

    x: (M, H) activations (bf16 or f32), w: (H, V), b: (V,).
    Returns an (M, V) float32 tensor of log-probabilities.

    Tile sizing: the resident output slab is (tm, V_padded) f32; with tm=128
    and V=32k that is 16 MiB, which fits the 64 MiB vmem_limit_bytes below
    even on v7x (weight / activation tiles double-buffer on top of it).
    tv is lane-dense (multiple of 128).
    """
    m_dim, h_dim = x.shape
    v_dim = w.shape[1]
    assert w.shape[0] == h_dim and b.shape == (v_dim,)

    # Effective tiles: sublane-aligned M tile, lane-dense V tile.
    tm_eff = _round_up(min(tm, _round_up(max(m_dim, 1), 8)), 8)
    tv_eff = _round_up(min(tv, _round_up(v_dim, 128)), 128)
    m_pad = _round_up(m_dim, tm_eff)
    v_pad = _round_up(v_dim, tv_eff)

    b32 = b.astype(jnp.float32)
    if m_pad != m_dim:
        x = jnp.pad(x, ((0, m_pad - m_dim), (0, 0)))
    if v_pad != v_dim:
        w = jnp.pad(w, ((0, 0), (0, v_pad - v_dim)))
        # Large negative bias on padded vocab columns so they do not perturb
        # the logsumexp over the real columns.
        b32 = jnp.pad(b32, (0, v_pad - v_dim), constant_values=-1e30)
    b2d = b32.reshape(1, v_pad)

    grid = (m_pad // tm_eff, v_pad // tv_eff)

    out = pl.pallas_call(
        _lm_head_log_softmax_kernel,
        out_shape=jax.ShapeDtypeStruct((m_pad, v_pad), jnp.float32),
        grid_spec=pltpu.PrefetchScalarGridSpec(
            num_scalar_prefetch=0,
            grid=grid,
            in_specs=[
                # activations: full H per tile (H is the contraction dim),
                # re-fetched only when the M tile changes.
                pl.BlockSpec((tm_eff, h_dim), lambda i, j: (i, 0)),
                # LM-head weight: streamed (H, tV) lane-dense tiles.
                pl.BlockSpec((h_dim, tv_eff), lambda i, j: (0, j)),
                # bias: (1, tV)
                pl.BlockSpec((1, tv_eff), lambda i, j: (0, j)),
            ],
            # Output block resident across the V axis (index map ignores j),
            # so normalized log-probs are written to HBM exactly once.
            out_specs=pl.BlockSpec((tm_eff, v_pad), lambda i, j: (i, 0)),
            scratch_shapes=[
                pltpu.VMEM((tm_eff, 1), jnp.float32),   # running max m
                pltpu.VMEM((tm_eff, 1), jnp.float32),   # running sum-exp l
            ],
        ),
        compiler_params=pltpu.CompilerParams(
            dimension_semantics=("parallel", "arbitrary"),
            vmem_limit_bytes=64 * 1024 * 1024,
        ),
    )(x, w, b2d)

    if m_pad == m_dim and v_pad == v_dim:
        return out
    return out[:m_dim, :v_dim]


# --------------------------------------------------------------------------
# Concrete SequentialLanguageModel (mirrors the PyTorch forward() semantics)
# --------------------------------------------------------------------------
class SimpleSequentialLM:
    """Concrete, stateless realization of SequentialLanguageModel.

    P(w_s = v | w_{s-1}, ...) = softmax(embedding[w_{s-1}] @ W + b)[v]
    with a dedicated SOS embedding row for the empty prefix.  `prev` carries
    no state for this LM and is returned unchanged (as the reference allows).
    """

    def __init__(self, vocab_size, hidden_size, key,
                 param_dtype=jnp.bfloat16, tm=128, tv=512):
        if vocab_size <= 0:
            raise ValueError("vocab_size must be positive")
        self.vocab_size = int(vocab_size)
        self.hidden_size = int(hidden_size)
        self.sos = self.vocab_size          # extra embedding row for SOS
        self.tm = tm
        self.tv = tv
        k_e, k_w, k_b = jax.random.split(key, 3)
        scale = 1.0 / jnp.sqrt(jnp.float32(hidden_size))
        self.embedding = (jax.random.normal(
            k_e, (self.vocab_size + 1, self.hidden_size), jnp.float32)
            * scale).astype(param_dtype)
        self.w = (jax.random.normal(
            k_w, (self.hidden_size, self.vocab_size), jnp.float32)
            * scale).astype(param_dtype)
        self.b = 0.02 * jax.random.normal(k_b, (self.vocab_size,), jnp.float32)

    # --- reference API -----------------------------------------------------
    def update_input(self, prev, hist):
        return prev

    def calc_idx_log_probs(self, hist, prev, idx):
        s_len, n = hist.shape
        idx = jnp.asarray(idx, dtype=jnp.int32)
        if idx.ndim == 0:
            idx = jnp.full((n,), idx, dtype=jnp.int32)
        if s_len == 0:
            # Empty prefix for every sequence -> SOS everywhere.
            last_tok = jnp.full((n,), jnp.int32(self.sos))
        else:
            # Last token of prefix hist[:idx[n], n] (SOS when idx == 0).
            prev_tok = hist[jnp.clip(idx - 1, 0, s_len - 1), jnp.arange(n)]
            last_tok = jnp.where(idx == 0, jnp.int32(self.sos), prev_tok)
        # Decode path: gather ONLY the N needed rows before the kernel.
        x = jnp.take(self.embedding, last_tok, axis=0)            # (N, H)
        log_probs = lm_head_log_probs(x, self.w, self.b, tm=self.tm, tv=self.tv)
        return log_probs, dict(prev)

    def calc_full_log_probs(self, hist, prev):
        s_len, n = hist.shape
        sos_row = jnp.full((1, n), self.sos, dtype=hist.dtype)
        shifted = jnp.concatenate([sos_row, hist], axis=0)        # (S + 1, N)
        # TODO(synk): gather embedding rows inside the kernel (token ids via
        # scalar prefetch / SMEM) instead of materializing the (M, H)
        # activation tensor in HBM; the gather is a tiny fraction of the
        # traffic (H << V) so it is done in plain JAX here.
        x = jnp.take(self.embedding, shifted.reshape(-1), axis=0)  # (M, H)
        log_probs = lm_head_log_probs(x, self.w, self.b, tm=self.tm, tv=self.tv)
        return log_probs.reshape(s_len + 1, n, self.vocab_size)

    def forward(self, hist, prev=None, idx=None):
        if prev is None:
            prev = {}
        if hist.ndim != 2:
            raise RuntimeError("hist must be 2 dimensional")
        s_len, n = hist.shape
        prev = self.update_input(prev, hist)
        if idx is None:
            return self.calc_full_log_probs(hist, prev)
        # Static (python int) range check mirrors the reference; traced
        # tensors cannot raise, so they are only normalized.
        if isinstance(idx, int) and (idx < -s_len - 1 or idx > s_len):
            raise RuntimeError(
                f"All values in idx must be between ({-s_len - 1}, {s_len})")
        idx_ = jnp.asarray(idx, dtype=jnp.int32)
        if idx_.ndim == 1 and idx_.shape[0] == 1:
            idx_ = idx_.reshape(())
        if idx_.ndim == 1 and idx_.shape[0] != n:
            raise RuntimeError(f"Expected dim 0 of idx to be of size {n}")
        idx_ = (idx_ + s_len + 1) % (s_len + 1)   # normalize negatives
        return self.calc_idx_log_probs(hist, prev, idx_)

    __call__ = forward


# --------------------------------------------------------------------------
# Reference (plain JAX, f32, highest precision) for validation
# --------------------------------------------------------------------------
def _ref_log_probs(x, w, b):
    logits = jnp.dot(x.astype(jnp.float32), w.astype(jnp.float32),
                     precision=jax.lax.Precision.HIGHEST) + b.astype(jnp.float32)
    return jax.nn.log_softmax(logits, axis=-1)


if __name__ == "__main__":
    key = jax.random.PRNGKey(0)
    k_model, k_hist = jax.random.split(key)

    S, N = 8, 2
    VOCAB, HIDDEN = 300, 64      # V not a multiple of 128 -> exercises padding

    # Small tiles so the tiny demo exercises multi-tile M and V grids
    # (production defaults are tm=128, tv=512).
    lm = SimpleSequentialLM(VOCAB, HIDDEN, k_model, tm=8, tv=128)
    hist = jax.random.randint(k_hist, (S, N), 0, VOCAB, dtype=jnp.int32)

    # ---- idx=None path: full (S + 1, N, V) log-probs ------------------------
    full = jax.block_until_ready(lm(hist))
    assert full.shape == (S + 1, N, VOCAB)

    shifted = jnp.concatenate([jnp.full((1, N), lm.sos, hist.dtype), hist], 0)
    ref_full = _ref_log_probs(
        jnp.take(lm.embedding, shifted.reshape(-1), axis=0), lm.w, lm.b
    ).reshape(S + 1, N, VOCAB)
    err = float(jnp.max(jnp.abs(full - ref_full)))
    assert jnp.allclose(full, ref_full, atol=1e-2, rtol=1e-2), err
    # Rows must be proper log-distributions.
    assert jnp.allclose(jnp.sum(jnp.exp(full), axis=-1), 1.0, atol=1e-3)

    # ---- idx path (python int): distribution after the full history --------
    lp_last, state = lm(hist, idx=-1)           # -1 normalizes to S
    lp_last = jax.block_until_ready(lp_last)
    assert lp_last.shape == (N, VOCAB)
    assert isinstance(state, dict)
    assert jnp.allclose(lp_last, ref_full[S], atol=1e-2, rtol=1e-2)

    # ---- idx path (per-sequence tensor) -------------------------------------
    idx_vec = jnp.array([0, 5], dtype=jnp.int32)
    lp_vec, _ = lm(hist, idx=idx_vec)
    lp_vec = jax.block_until_ready(lp_vec)
    ref_vec = jnp.stack([ref_full[0, 0], ref_full[5, 1]], axis=0)
    assert jnp.allclose(lp_vec, ref_vec, atol=1e-2, rtol=1e-2)

    print("KERNEL_OK")
</pallas_src>

<mosaic_0001>
module attributes {stable_mosaic.version = 11 : i64} {
  func.func @_lm_head_log_softmax_kernel(%arg0: i32, %arg1: i32, %arg2: memref<8x64xbf16, #tpu.memory_space<vmem>>, %arg3: memref<64x128xbf16, #tpu.memory_space<vmem>>, %arg4: memref<1x128xf32, #tpu.memory_space<vmem>>, %arg5: memref<8x384xf32, #tpu.memory_space<vmem>>, %arg6: memref<8x1xf32, #tpu.memory_space<vmem>>, %arg7: memref<8x1xf32, #tpu.memory_space<vmem>>) attributes {dimension_semantics = [#tpu.dimension_semantics<parallel>, #tpu.dimension_semantics<arbitrary>], iteration_bounds = array<i64: 3, 3>, scalar_prefetch = 0 : i64, scratch_operands = 2 : i64, tpu.core_type = #tpu.core_type<tc>, window_params = [{transform_indices = @transform_0, window_bounds = array<i64: 8, 64>}, {transform_indices = @transform_1, window_bounds = array<i64: 64, 128>}, {transform_indices = @transform_2, window_bounds = array<i64: 1, 128>}, {transform_indices = @transform_3, window_bounds = array<i64: 8, 384>}]} {
    %c0_i32 = arith.constant 0 : i32
    %0 = arith.cmpi eq, %arg1, %c0_i32 : i32
    %1 = arith.extui %0 : i1 to i32
    %c0_i32_0 = arith.constant 0 : i32
    %2 = arith.cmpi ne, %1, %c0_i32_0 : i32
    scf.if %2 {
      %cst_18 = arith.constant 0xFF800000 : f32
      %32 = vector.broadcast %cst_18 : f32 to vector<8x1xf32>
      %c0_19 = arith.constant 0 : index
      %c0_20 = arith.constant 0 : index
      %33 = vector.load %arg6[%c0_19, %c0_20] : memref<8x1xf32, #tpu.memory_space<vmem>>, vector<8x1xf32>
      tpu.vector_store %arg6[%c0_19, %c0_20], %32 {strides = array<i32>} : memref<8x1xf32, #tpu.memory_space<vmem>>, vector<8x1xf32>,
      %cst_21 = arith.constant 0.000000e+00 : f32
      %34 = vector.broadcast %cst_21 : f32 to vector<8x1xf32>
      %c0_22 = arith.constant 0 : index
      %c0_23 = arith.constant 0 : index
      %35 = vector.load %arg7[%c0_22, %c0_23] : memref<8x1xf32, #tpu.memory_space<vmem>>, vector<8x1xf32>
      tpu.vector_store %arg7[%c0_22, %c0_23], %34 {strides = array<i32>} : memref<8x1xf32, #tpu.memory_space<vmem>>, vector<8x1xf32>,
    } else {
    }
    %c0 = arith.constant 0 : index
    %c0_1 = arith.constant 0 : index
    %3 = vector.load %arg2[%c0, %c0_1] : memref<8x64xbf16, #tpu.memory_space<vmem>>, vector<8x64xbf16>
    %c0_2 = arith.constant 0 : index
    %c0_3 = arith.constant 0 : index
    %4 = vector.load %arg3[%c0_2, %c0_3] : memref<64x128xbf16, #tpu.memory_space<vmem>>, vector<64x128xbf16>
    %cst = arith.constant dense<0.000000e+00> : vector<8x128xf32>
    %5 = tpu.matmul %3, %4, %cst {dimension_numbers = #tpu.dot_dimension_numbers<[1], [0], [0], [1], [0, 0, 1, 1], [], []>} : vector<8x64xbf16>, vector<64x128xbf16>, vector<8x128xf32> -> vector<8x128xf32>
    %c0_4 = arith.constant 0 : index
    %c0_5 = arith.constant 0 : index
    %6 = vector.load %arg4[%c0_4, %c0_5] : memref<1x128xf32, #tpu.memory_space<vmem>>, vector<1x128xf32>
    %7 = vector.broadcast %6 : vector<1x128xf32> to vector<8x128xf32>
    %8 = arith.addf %5, %7 : vector<8x128xf32>
    %c0_6 = arith.constant 0 : index
    %c0_7 = arith.constant 0 : index
    %9 = vector.load %arg6[%c0_6, %c0_7] : memref<8x1xf32, #tpu.memory_space<vmem>>, vector<8x1xf32>
    %cst_8 = arith.constant dense<0xFF800000> : vector<8xf32>
    %10 = vector.multi_reduction <maximumf>, %8, %cst_8 [1] : vector<8x128xf32> to vector<8xf32>
    %11 = vector.shape_cast %10 : vector<8xf32> to vector<8x1xf32>
    %12 = arith.maximumf %9, %11 : vector<8x1xf32>
    %c0_9 = arith.constant 0 : index
    %c0_10 = arith.constant 0 : index
    %13 = vector.load %arg7[%c0_9, %c0_10] : memref<8x1xf32, #tpu.memory_space<vmem>>, vector<8x1xf32>
    %14 = arith.subf %9, %12 : vector<8x1xf32>
    %15 = math.exp %14 : vector<8x1xf32>
    %16 = arith.mulf %13, %15 : vector<8x1xf32>
    %17 = vector.broadcast %12 : vector<8x1xf32> to vector<8x128xf32>
    %18 = arith.subf %8, %17 : vector<8x128xf32>
    %19 = math.exp %18 : vector<8x128xf32>
    %cst_11 = arith.constant dense<0.000000e+00> : vector<8xf32>
    %20 = vector.multi_reduction <add>, %19, %cst_11 [1] : vector<8x128xf32> to vector<8xf32>
    %21 = vector.shape_cast %20 : vector<8xf32> to vector<8x1xf32>
    %22 = arith.addf %16, %21 : vector<8x1xf32>
    %c0_12 = arith.constant 0 : index
    %c0_13 = arith.constant 0 : index
    %23 = vector.load %arg7[%c0_12, %c0_13] : memref<8x1xf32, #tpu.memory_space<vmem>>, vector<8x1xf32>
    tpu.vector_store %arg7[%c0_12, %c0_13], %22 {strides = array<i32>} : memref<8x1xf32, #tpu.memory_space<vmem>>, vector<8x1xf32>,
    %c0_14 = arith.constant 0 : index
    %c0_15 = arith.constant 0 : index
    %24 = vector.load %arg6[%c0_14, %c0_15] : memref<8x1xf32, #tpu.memory_space<vmem>>, vector<8x1xf32>
    tpu.vector_store %arg6[%c0_14, %c0_15], %12 {strides = array<i32>} : memref<8x1xf32, #tpu.memory_space<vmem>>, vector<8x1xf32>,
    %c128_i32 = arith.constant 128 : i32
    %25 = arith.muli %arg1, %c128_i32 : i32
    %26 = tpu.assume_multiple %25, 128 : i32
    %c0_16 = arith.constant 0 : index
    %27 = arith.index_cast %26 : i32 to index
    %28 = vector.load %arg5[%c0_16, %27] : memref<8x384xf32, #tpu.memory_space<vmem>>, vector<8x128xf32>
    tpu.vector_store %arg5[%c0_16, %27], %8 {strides = array<i32>} : memref<8x384xf32, #tpu.memory_space<vmem>>, vector<8x128xf32>,
    %c2_i32 = arith.constant 2 : i32
    %29 = arith.cmpi eq, %arg1, %c2_i32 : i32
    %30 = arith.extui %29 : i1 to i32
    %c0_i32_17 = arith.constant 0 : i32
    %31 = arith.cmpi ne, %30, %c0_i32_17 : i32
    scf.if %31 {
      %c0_18 = arith.constant 0 : index
      %c0_19 = arith.constant 0 : index
      %32 = vector.load %arg5[%c0_18, %c0_19] : memref<8x384xf32, #tpu.memory_space<vmem>>, vector<8x384xf32>
      %c0_20 = arith.constant 0 : index
      %c0_21 = arith.constant 0 : index
      %33 = vector.load %arg6[%c0_20, %c0_21] : memref<8x1xf32, #tpu.memory_space<vmem>>, vector<8x1xf32>
      %c0_22 = arith.constant 0 : index
      %c0_23 = arith.constant 0 : index
      %34 = vector.load %arg7[%c0_22, %c0_23] : memref<8x1xf32, #tpu.memory_space<vmem>>, vector<8x1xf32>
      %35 = math.log %34 : vector<8x1xf32>
      %36 = arith.addf %33, %35 : vector<8x1xf32>
      %37 = vector.broadcast %36 : vector<8x1xf32> to vector<8x384xf32>
      %38 = arith.subf %32, %37 : vector<8x384xf32>
      %c0_24 = arith.constant 0 : index
      %c0_25 = arith.constant 0 : index
      %39 = vector.load %arg5[%c0_24, %c0_25] : memref<8x384xf32, #tpu.memory_space<vmem>>, vector<8x384xf32>
      tpu.vector_store %arg5[%c0_24, %c0_25], %38 {strides = array<i32>} : memref<8x384xf32, #tpu.memory_space<vmem>>, vector<8x384xf32>,
    } else {
    }
    return
  }
  func.func @transform_0(%arg0: i32, %arg1: i32) -> (i32, i32) {
    %c0_i32 = arith.constant 0 : i32
    %c0_i32_0 = arith.constant 0 : i32
    return %arg0, %c0_i32 : i32, i32
  }
  func.func @transform_1(%arg0: i32, %arg1: i32) -> (i32, i32) {
    %c0_i32 = arith.constant 0 : i32
    %c0_i32_0 = arith.constant 0 : i32
    return %c0_i32, %arg1 : i32, i32
  }
  func.func @transform_2(%arg0: i32, %arg1: i32) -> (i32, i32) {
    %c0_i32 = arith.constant 0 : i32
    %c0_i32_0 = arith.constant 0 : i32
    return %c0_i32, %arg1 : i32, i32
  }
  func.func @transform_3(%arg0: i32, %arg1: i32) -> (i32, i32) {
    %c0_i32 = arith.constant 0 : i32
    %c0_i32_0 = arith.constant 0 : i32
    return %arg0, %c0_i32 : i32, i32
  }
}

</mosaic_0001>

<llo_original>
// kernel: tpu_custom_call.1
$region0: #{tpu_custom_call.1}
  #allocation0 [shape = 'u32[]', space=smem, size = 0x4, offset = 0x4, fixed_abs, tag = 'smem constant byte address 0x4 - core index']
  #allocation1 [shape = 'u32[144,128]{1,0:T(1,128)}', space=vmem, size = 0x12000, scoped, tag = 'internal scratch']
  #allocation2 [shape = 'f32[8,1]{1,0:T(8,128)}', space=vmem, size = 0x1000, scoped, tag = 'scratch operand']
  #allocation3 [shape = 'f32[8,1]{1,0:T(8,128)}', space=vmem, size = 0x1000, scoped, tag = 'scratch operand']
  %s0 = inlined_call_operand.hbm [shape: bf16[24,64], index: 0, kind: input, shape index: {}]
  %s1 = inlined_call_operand.hbm [shape: bf16[64,384], index: 1, kind: input, shape index: {}]
  %s2 = inlined_call_operand.hbm [shape: f32[1,384], index: 2, kind: input, shape index: {}]
  %s3 = inlined_call_operand.hbm [shape: f32[24,384], index: 3, kind: output, shape index: {}]
  %s4 = sld [smem:[#allocation0]]
  $region65: #{tpu_custom_call.1} parent=0
    _
  %s6 = ssub.s32 1, %s4
  %s7 = scalar_select 0, %s6, %s4
  $region1: #{tpu_custom_call.1} parent=0
    #allocation4 [shape = 'u8[4096]{0}', space=vmem, size = 0x1000, scoped, tag = 'input window, operand 0']
    #allocation5 [shape = 's32[2]{0}', space=sflag, size = 0x8, scoped, tag = 'scoped memory for tpu_custom_call.1']
    #allocation6 [shape = 's32[2]{0}', space=sflag, size = 0x8, scoped, tag = 'scoped memory for tpu_custom_call.1']
    #allocation7 [shape = 'u8[32768]{0}', space=vmem, size = 0x8000, scoped, tag = 'input window, operand 1']
    #allocation8 [shape = 's32[2]{0}', space=sflag, size = 0x8, scoped, tag = 'scoped memory for tpu_custom_call.1']
    #allocation9 [shape = 'u8[1024]{0}', space=vmem, size = 0x400, scoped, tag = 'input window, operand 2']
    #allocation10 [shape = 'u8[24576]{0}', space=vmem, size = 0x6000, scoped, tag = 'output window, operand 0']
    %8 = vsyncpa [#allocation5], 0
    %s9 = scalar_lea.sflag [#allocation5], 1
    %10 = vsyncpa %s9, 0
    %11 = vsyncpa [#allocation8], 0
    %s12 = scalar_lea.sflag [#allocation8], 1
    %13 = vsyncpa %s12, 0
    %14 = vsyncpa [#allocation6], 0
    %s15 = scalar_lea.sflag [#allocation6], 1
    %16 = vsyncpa %s15, 0
    loop: start=0, step=1, limit=11
    $region2: #{tpu_custom_call.1} parent=1 // loop_pre_header
      _
    $region3: #{tpu_custom_call.1} parent=1 // loop_header
      %s18 = sphi 0, %s22
      %p19 = scmp.ge.s32.totalorder %s18, 11
      %s25 = sphi 0, %s37
      %s26 = sphi 0, %s33
      %s27 = sphi 0, %s25
      %s28 = sphi 0, %s26
      %s29 = sphi 0, %s27
      %s30 = sphi 0, %s28
      %s40 = sphi 0, %s42
      %s43 = sphi 0, %s40
      %s44 = sphi 0, %s43
      %s60 = sphi 0, %s44
      %s66 = sphi 0, %s68
      %s69 = sphi 0, %s66
      %s70 = sphi 0, %s69
      %s86 = sphi 0, %s70
      %s92 = sphi 0, %s94
      %s95 = sphi 0, %s92
      %s96 = sphi 0, %s95
      %s112 = sphi 0, %s96
      %s118 = sphi 0, %s120
      %s121 = sphi 0, %s118
      %s122 = sphi 0, %s121
      %s138 = sphi 0, %s122
    $region4: #{tpu_custom_call.1} parent=1 // loop_header_branch
      %21 = sbr.rel (%p19) target = $region8
    $region5: #{tpu_custom_call.1} parent=1 // loop_body
      %s23 = ssub.s32 %s18, 1
      %s24 = ssub.s32 %s18, 2
      %s31 = sadd.s32 1, %s26
      %p32 = scmp.ge.s32.totalorder %s31, 3
      %s33 = scalar_select %p32, 0, %s31
      %s34 = sadd.s32 1, %s25
      %s35 = scalar_select %p32, %s34, %s25
      %p36 = scmp.ge.s32.totalorder %s35, 3
      %s37 = scalar_select %p36, 0, %s35
      %s38 = ssub.s32 %s25, %s37
      %p39 = scmp.eq.s32.totalorder %s38, 0
      %s41 = sadd.s32 %s40, 1
      %s42 = scalar_select %p39, %s40, %s41
      %p45 = pneg %p39
      %p46 = scmp.eq.s32.totalorder %s18, 8
      %p47 = por %p45, %p46
      %p48 = scmp.ne.s32.totalorder %s40, %s43
      %p49 = scmp.eq.s32.totalorder %s18, 0
      %p50 = por %p48, %p49
      %p51 = scmp.ne.s32.totalorder %s40, %s43
      %p52 = scmp.eq.s32.totalorder %s23, 8
      %p53 = por %p51, %p52
      %p54 = scmp.ne.s32.totalorder %s43, %s44
      %p55 = scmp.eq.s32.totalorder %s23, 0
      %p56 = por %p54, %p55
      %p57 = scmp.ne.s32.totalorder %s43, %s44
      %p58 = scmp.eq.s32.totalorder %s24, 8
      %p59 = por %p57, %p58
      %p61 = scmp.ne.s32.totalorder %s44, %s60
      %p62 = scmp.eq.s32.totalorder %s24, 0
      %p63 = por %p61, %p62
      %s64 = ssub.s32 %s26, %s33
      %p65 = scmp.eq.s32.totalorder %s64, 0
      %s67 = sadd.s32 %s66, 1
      %s68 = scalar_select %p65, %s66, %s67
      %p71 = pneg %p65
      %p72 = scmp.eq.s32.totalorder %s18, 8
      %p73 = por %p71, %p72
      %p74 = scmp.ne.s32.totalorder %s66, %s69
      %p75 = scmp.eq.s32.totalorder %s18, 0
      %p76 = por %p74, %p75
      %p77 = scmp.ne.s32.totalorder %s66, %s69
      %p78 = scmp.eq.s32.totalorder %s23, 8
      %p79 = por %p77, %p78
      %p80 = scmp.ne.s32.totalorder %s69, %s70
      %p81 = scmp.eq.s32.totalorder %s23, 0
      %p82 = por %p80, %p81
      %p83 = scmp.ne.s32.totalorder %s69, %s70
      %p84 = scmp.eq.s32.totalorder %s24, 8
      %p85 = por %p83, %p84
      %p87 = scmp.ne.s32.totalorder %s70, %s86
      %p88 = scmp.eq.s32.totalorder %s24, 0
      %p89 = por %p87, %p88
      %s90 = ssub.s32 %s26, %s33
      %p91 = scmp.eq.s32.totalorder %s90, 0
      %s93 = sadd.s32 %s92, 1
      %s94 = scalar_select %p91, %s92, %s93
      %p97 = pneg %p91
      %p98 = scmp.eq.s32.totalorder %s18, 8
      %p99 = por %p97, %p98
      %p100 = scmp.ne.s32.totalorder %s92, %s95
      %p101 = scmp.eq.s32.totalorder %s18, 0
      %p102 = por %p100, %p101
      %p103 = scmp.ne.s32.totalorder %s92, %s95
      %p104 = scmp.eq.s32.totalorder %s23, 8
      %p105 = por %p103, %p104
      %p106 = scmp.ne.s32.totalorder %s95, %s96
      %p107 = scmp.eq.s32.totalorder %s23, 0
      %p108 = por %p106, %p107
      %p109 = scmp.ne.s32.totalorder %s95, %s96
      %p110 = scmp.eq.s32.totalorder %s24, 8
      %p111 = por %p109, %p110
      %p113 = scmp.ne.s32.totalorder %s96, %s112
      %p114 = scmp.eq.s32.totalorder %s24, 0
      %p115 = por %p113, %p114
      %s116 = ssub.s32 %s25, %s37
      %p117 = scmp.eq.s32.totalorder %s116, 0
      %s119 = sadd.s32 %s118, 1
      %s120 = scalar_select %p117, %s118, %s119
      %p123 = pneg %p117
      %p124 = scmp.eq.s32.totalorder %s18, 8
      %p125 = por %p123, %p124
      %p126 = scmp.ne.s32.totalorder %s118, %s121
      %p127 = scmp.eq.s32.totalorder %s18, 0
      %p128 = por %p126, %p127
      %p129 = scmp.ne.s32.totalorder %s118, %s121
      %p130 = scmp.eq.s32.totalorder %s23, 8
      %p131 = por %p129, %p130
      %p132 = scmp.ne.s32.totalorder %s121, %s122
      %p133 = scmp.eq.s32.totalorder %s23, 0
      %p134 = por %p132, %p133
      %p135 = scmp.ne.s32.totalorder %s121, %s122
      %p136 = scmp.eq.s32.totalorder %s24, 8
      %p137 = por %p135, %p136
      %p139 = scmp.ne.s32.totalorder %s122, %s138
      %p140 = scmp.eq.s32.totalorder %s24, 0
      %p141 = por %p139, %p140
      %p142 = scmp.le.s32.totalorder 1, %s18
      %p143 = scmp.lt.s32.totalorder %s18, 10
      %p144 = pnand %p142, %p143
      %p145 = pneg %p144
      // Predicated region
      $region9: #{tpu_custom_call.1} parent=5 // pred_check
        _
      $region10: #{tpu_custom_call.1} parent=5 // pred_check_branch
        %147 = sbr.rel (%p144) target = $region12
      $region11: #{tpu_custom_call.1} parent=5 // pred_region
        %s148 = ssub.s32 %s18, 1
      $region12: #{tpu_custom_call.1} parent=5 // pred_fallthru
        _
      %p149 = scmp.lt.s32.totalorder %s18, 9
      // Predicated region
      $region13: #{tpu_custom_call.1} parent=5 // pred_check
        %p150 = pneg %p149
      $region14: #{tpu_custom_call.1} parent=5 // pred_check_branch
        %152 = sbr.rel (%p150) target = $region16
      $region15: #{tpu_custom_call.1} parent=5 // pred_region
        // Predicated region
        $region17: #{tpu_custom_call.1} parent=15 // pred_check
          %p153 = pneg %p50
        $region18: #{tpu_custom_call.1} parent=15 // pred_check_branch
          %155 = sbr.rel (%p153) target = $region20
        $region19: #{tpu_custom_call.1} parent=15 // pred_region
          %s156 = sand.u32 %s40, 1
          %s157 = scalar_lea.sflag [#allocation5], %s156
          %s158 = sand.u32 %s40, 1
          %s159 = smul.addr %s158, 4
          %s160 = scalar_lea.vmem [#allocation4], %s159
          %s162 = ssub.s32 64, 64
          %163 = vsyncadd %s157, %s162
          %s164 = smul.addr %s25, 64
          %s165 = scalar_lea.hbm %s0, %s164
          %s167 = sshll.u32 %s160, 4
          %s168 = int_to_ptr.vmem [resolvable:$true] %s167
          %170 = dma.hbm_to_vmem [thread:$0]  %s165, 64, %s168, %s157
        $region20: #{tpu_custom_call.1} parent=15 // pred_fallthru
          _
        // Predicated region
        $region21: #{tpu_custom_call.1} parent=15 // pred_check
          %p171 = pneg %p76
        $region22: #{tpu_custom_call.1} parent=15 // pred_check_branch
          %173 = sbr.rel (%p171) target = $region24
        $region23: #{tpu_custom_call.1} parent=15 // pred_region
          %s174 = sand.u32 %s18, 1
          %s175 = scalar_lea.sflag [#allocation8], %s174
          %s176 = sand.u32 %s66, 1
          %s177 = smul.addr %s176, 32
          %s178 = scalar_lea.vmem [#allocation7], %s177
          %s180 = ssub.s32 512, 512
          %181 = vsyncadd %s175, %s180
          %s182 = smul.addr %s26, 64
          %s183 = scalar_lea.hbm %s1, %s182
          %s184 = sshll.u32 %s178, 4
          %s185 = int_to_ptr.vmem [resolvable:$true] %s184
          %190 = dma.hbm_to_vmem [thread:$0]  %s183, 512, %s185, %s175, 192, 64, 4
        $region24: #{tpu_custom_call.1} parent=15 // pred_fallthru
          _
        // Predicated region
        $region25: #{tpu_custom_call.1} parent=15 // pred_check
          %p191 = pneg %p102
        $region26: #{tpu_custom_call.1} parent=15 // pred_check_branch
          %193 = sbr.rel (%p191) target = $region28
        $region27: #{tpu_custom_call.1} parent=15 // pred_region
          %s194 = sand.u32 %s18, 1
          %s195 = scalar_lea.sflag [#allocation8], %s194
          %s196 = sand.u32 %s92, 1
          %s197 = scalar_lea.vmem [#allocation9], %s196
          %s199 = ssub.s32 16, 16
          %200 = vsyncadd %s195, %s199
          %s201 = smul.addr %s26, 16
          %s202 = scalar_lea.hbm %s2, %s201
          %s204 = sshll.u32 %s197, 4
          %s205 = int_to_ptr.vmem [resolvable:$true] %s204
          %207 = dma.hbm_to_vmem [thread:$0]  %s202, 16, %s205, %s195
        $region28: #{tpu_custom_call.1} parent=15 // pred_fallthru
          _
      $region16: #{tpu_custom_call.1} parent=5 // pred_fallthru
        _
      %p208 = scmp.le.s32.totalorder 1, %s18
      %p209 = scmp.lt.s32.totalorder %s18, 10
      %p210 = pnand %p208, %p209
      %p211 = pneg %p210
      // Predicated region
      $region29: #{tpu_custom_call.1} parent=5 // pred_check
        _
      $region30: #{tpu_custom_call.1} parent=5 // pred_check_branch
        %213 = sbr.rel (%p210) target = $region32
      $region31: #{tpu_custom_call.1} parent=5 // pred_region
        %s214 = ssub.s32 %s18, 1
        %s215 = sand.u32 %s43, 1
        %s216 = scalar_lea.sflag [#allocation5], %s215
        %s217 = sand.u32 %s43, 1
        %s218 = smul.addr %s217, 4
        %s219 = scalar_lea.vmem [#allocation4], %s218
        // Predicated region
        $region33: #{tpu_custom_call.1} parent=31 // pred_check
          %p220 = pneg %p56
        $region34: #{tpu_custom_call.1} parent=31 // pred_check_branch
          %222 = sbr.rel (%p220) target = $region36
        $region35: #{tpu_custom_call.1} parent=31 // pred_region
          %223 = dma.done %s216, 64
        $region36: #{tpu_custom_call.1} parent=31 // pred_fallthru
          _
        %s224 = sand.u32 %s23, 1
        %s225 = scalar_lea.sflag [#allocation8], %s224
        %s226 = sand.u32 %s69, 1
        %s227 = smul.addr %s226, 32
        %s228 = scalar_lea.vmem [#allocation7], %s227
        // Predicated region
        $region37: #{tpu_custom_call.1} parent=31 // pred_check
          %p229 = pneg %p82
        $region38: #{tpu_custom_call.1} parent=31 // pred_check_branch
          %231 = sbr.rel (%p229) target = $region40
        $region39: #{tpu_custom_call.1} parent=31 // pred_region
          %232 = dma.done %s225, 512
        $region40: #{tpu_custom_call.1} parent=31 // pred_fallthru
          _
        %s233 = sand.u32 %s23, 1
        %s234 = scalar_lea.sflag [#allocation8], %s233
        %s235 = sand.u32 %s95, 1
        %s236 = scalar_lea.vmem [#allocation9], %s235
        // Predicated region
        $region41: #{tpu_custom_call.1} parent=31 // pred_check
          %p237 = pneg %p108
        $region42: #{tpu_custom_call.1} parent=31 // pred_check_branch
          %239 = sbr.rel (%p237) target = $region44
        $region43: #{tpu_custom_call.1} parent=31 // pred_region
          %240 = dma.done %s234, 16
        $region44: #{tpu_custom_call.1} parent=31 // pred_fallthru
          _
        %s241 = sand.u32 %s43, 1
        %s242 = scalar_lea.sflag [#allocation5], %s241
        %s243 = sand.u32 %s43, 1
        %s244 = smul.addr %s243, 4
        %s245 = scalar_lea.vmem [#allocation4], %s244
        %p246 = pneg %p56
        %p247 = pneg %p53
        %s248 = sand.u32 %s23, 1
        %s249 = scalar_lea.sflag [#allocation8], %s248
        %s250 = sand.u32 %s69, 1
        %s251 = smul.addr %s250, 32
        %s252 = scalar_lea.vmem [#allocation7], %s251
        %p253 = pneg %p82
        %p254 = pneg %p79
        %s255 = sand.u32 %s23, 1
        %s256 = scalar_lea.sflag [#allocation8], %s255
        %s257 = sand.u32 %s95, 1
        %s258 = scalar_lea.vmem [#allocation9], %s257
        %p259 = pneg %p108
        %p260 = pneg %p105
        %p261 = pneg %p134
        %p262 = pneg %p131
        %s263 = sand.u32 %s121, 1
        %s264 = scalar_lea.sflag [#allocation6], %s263
        %s265 = sand.u32 %s121, 1
        %s266 = smul.addr %s265, 24
        %s267 = scalar_lea.vmem [#allocation10], %s266
        %p269 = scmp.eq.s32.totalorder %s28, 0
        // Predicated region
        $region45: #{tpu_custom_call.1} parent=31 // pred_check
          %p270 = pneg %p269
        $region46: #{tpu_custom_call.1} parent=31 // pred_check_branch
          %272 = sbr.rel (%p270) target = $region48
        $region47: #{tpu_custom_call.1} parent=31 // pred_region
          %vm273 = vcmask 7168
          %274 = vst.msk [vmem:[#allocation2] sm:$0xff] %vm273, -inf
          %275 = vst.msk [vmem:[#allocation3] sm:$0xff] %vm273, 0.0
        $region48: #{tpu_custom_call.1} parent=31 // pred_fallthru
          _
        %v276 = vld [vmem:[%s219] sm:$0xf]
        %v277 = vld [vmem:[%s228] sm:$0xf]
        %v278 = vld [vmem:[%s228 + $0x4] sm:$0xf]
        %v279 = vld [vmem:[%s228 + $0x8] sm:$0xf]
        %v280 = vld [vmem:[%s228 + $0xc] sm:$0xf]
        %v281 = vld [vmem:[%s228 + $0x10] sm:$0xf]
        %v282 = vld [vmem:[%s228 + $0x14] sm:$0xf]
        %v283 = vld [vmem:[%s228 + $0x18] sm:$0xf]
        %v284 = vld [vmem:[%s228 + $0x1c] sm:$0xf]
        %v285 = vld [vmem:[%s236] sm:$0x1]
        %v287 = vlaneseq
        %v288 = vshrl.u32 %v287, 7
        %v289 = vsub.s32 0, %v288
        %v290 = vrot.slane %v285, %v289
        %v300 = vunpack.c.l.b16 %v277
        %v301 = vunpack.c.l.b16 %v278
        %v302 = vunpack.c.l.b16 %v279
        %v303 = vunpack.c.l.b16 %v280
        %v304 = vunpack.c.l.b16 %v281
        %v305 = vunpack.c.l.b16 %v282
        %v306 = vunpack.c.l.b16 %v283
        %v307 = vunpack.c.l.b16 %v284
        %v308 = vpack.c.b16 %v301, %v300
        %v309 = vpack.c.b16 %v303, %v302
        %v310 = vpack.c.b16 %v305, %v304
        %v311 = vpack.c.b16 %v307, %v306
        %vm316 = vcmask 523264
        %v318 = vsel %vm316, %v276, 0
        %320 = vmatprep.subr.bf16.mxu0 0
        %321 = vmatpush1.bf16.msra.mxu0 %v308
        %322 = vmatprep.subr.bf16.mxu0 0
        %323 = vmatpush1.bf16.msra.mxu0 %v309
        %324 = vmatprep.subr.bf16.mxu0 0
        %325 = vmatpush1.bf16.msra.mxu0 %v310
        %326 = vmatprep.subr.bf16.mxu0 0
        %327 = vmatpush1.bf16.msra.mxu0 %v311
        %328 = vmatprep.subr.bf16.mxu0 0
        %329 = vmatpush1.bf16.msra.mxu0 0
        %330 = vmatprep.subr.bf16.mxu0 0
        %331 = vmatpush1.bf16.msra.mxu0 0
        %332 = vmatprep.subr.bf16.mxu0 0
        %333 = vmatpush1.bf16.msra.mxu0 0
        %334 = vmatprep.subr.bf16.mxu0 0
        %335 = vmatpush1.bf16.msra.mxu0 0
        %336 = vmatprep.subr.bf16.mxu0 0
        %337 = vmatpush1.bf16.msra.mxu0 0
        %338 = vmatprep.subr.bf16.mxu0 0
        %339 = vmatpush1.bf16.msra.mxu0 0
        %340 = vmatprep.subr.bf16.mxu0 0
        %341 = vmatpush1.bf16.msra.mxu0 0
        %342 = vmatprep.subr.bf16.mxu0 0
        %343 = vmatpush1.bf16.msra.mxu0 0
        %344 = vmatprep.subr.bf16.mxu0 0
        %345 = vmatpush1.bf16.msra.mxu0 0
        %346 = vmatprep.subr.bf16.mxu0 0
        %347 = vmatpush1.bf16.msra.mxu0 0
        %348 = vmatprep.subr.bf16.mxu0 0
        %349 = vmatpush1.bf16.msra.mxu0 0
        %350 = vmatprep.subr.bf16.mxu0 0
        %351 = vmatpush1.bf16.msra.mxu0 0
        %352 = vmatprep.mubr.bf16.mxu0 0
        %353 = vmatmul.mubr.bf16.gmra.mrb[0].mxu0 %v318
        %v354 = vpop.f32.mrb[0].mxu0
        %v355 = vadd.f32 %v290, %v354
        %v356 = vpop.f32.mrb[0].mxu0
        %v357 = vpop.f32.mrb[0].mxu0
        %v358 = vpop.f32.mrb[0].mxu0
        %359 = vdwg.mxu0
        %v360 = vld [vmem:[#allocation2] sm:$0xff]
        %361 = vmax.xlane.f32.xlu0 %v355
        %v362 = vpop.xlane.xlu0 %361
        %v363 = vmax.f32 %v360, %v362
        %v364 = vld [vmem:[#allocation3] sm:$0xff]
        %v365 = vsub.f32 %v360, %v363
        %v366 = vmul.f32 %v365, 1.442695
        %v367 = vpow.pop %v366
        %v368 = vmul.f32 %v364, %v367
        %370 = vset.pattern.permute.xlu0 0
        %371 = vperm.xlu0 %370, %v363
        %v372 = vpop.permute.xlu0 %371
        %v374 = vsub.f32 %v355, %v372
        %v375 = vmul.f32 %v374, 1.442695
        %v376 = vpow.pop %v375
        %377 = vadd.xlane.f32.xlu0 %v376
        %v378 = vpop.xlane.xlu0 %377
        %v379 = vadd.f32 %v368, %v378
        %vm380 = vcmask 7168
        %381 = vst.msk [vmem:[#allocation3] sm:$0xff] %vm380, %v379
        %382 = vst.msk [vmem:[#allocation2] sm:$0xff] %vm380, %v363
        %s383 = smul.u32 %s28, 128
        %s384 = sshra.s32 %s383, 7
        %s385 = sand.u32 %s383, 127
        %s386 = smul.addr %s384, 8
        %s387 = scalar_lea.vmem %s267, %s386 [#allocation10]
        %388 = vst [vmem:[%s387] sm:$0xff] %v355
        %p389 = scmp.eq.s32.totalorder %s28, 2
        // Predicated region
        $region49: #{tpu_custom_call.1} parent=31 // pred_check
          %p390 = pneg %p389
        $region50: #{tpu_custom_call.1} parent=31 // pred_check_branch
          %392 = sbr.rel (%p390) target = $region52
        $region51: #{tpu_custom_call.1} parent=31 // pred_region
          %v393 = vld [vmem:[%s267] sm:$0xff]
          %v394 = vld [vmem:[%s267 + $0x8] sm:$0xff]
          %v395 = vld [vmem:[%s267 + $0x10] sm:$0xff]
          %v396 = vld [vmem:[#allocation2] sm:$0xff]
          %v397 = vld [vmem:[#allocation3] sm:$0xff]
          %v398 = vlog2.pop %v397
          %v399 = vmul.f32 %v398, 0.6931472
          %v400 = vadd.f32 %v396, %v399
          %402 = vset.pattern.permute.xlu0 0
          %403 = vperm.xlu0 %402, %v400
          %v404 = vpop.permute.xlu0 %403
          %v406 = vsub.f32 %v393, %v404
          %v407 = vsub.f32 %v394, %v404
          %v408 = vsub.f32 %v395, %v404
          %409 = vst [vmem:[%s267] sm:$0xff] %v406
          %410 = vst [vmem:[%s267 + $0x8] sm:$0xff] %v407
          %411 = vst [vmem:[%s267 + $0x10] sm:$0xff] %v408
        $region52: #{tpu_custom_call.1} parent=31 // pred_fallthru
          _
        %s412 = sand.u32 %s121, 1
        %s413 = scalar_lea.sflag [#allocation6], %s412
        %s414 = sand.u32 %s121, 1
        %s415 = smul.addr %s414, 24
        %s416 = scalar_lea.vmem [#allocation10], %s415
        // Predicated region
        $region53: #{tpu_custom_call.1} parent=31 // pred_check
          %p417 = pneg %p131
        $region54: #{tpu_custom_call.1} parent=31 // pred_check_branch
          %419 = sbr.rel (%p417) target = $region56
        $region55: #{tpu_custom_call.1} parent=31 // pred_region
          %s421 = ssub.s32 384, 384
          %422 = vsyncadd %s413, %s421
          %s423 = smul.addr %s27, 3
          %s424 = smul.addr %s423, 128
          %s425 = scalar_lea.hbm %s3, %s424
          %s427 = sshll.u32 %s416, 4
          %s428 = int_to_ptr.vmem [resolvable:$true] %s427
          %430 = dma.vmem_to_hbm [thread:$0]  %s428, 384, %s425, %s413
        $region56: #{tpu_custom_call.1} parent=31 // pred_fallthru
          _
      $region32: #{tpu_custom_call.1} parent=5 // pred_fallthru
        _
      %p431 = scmp.le.s32.totalorder 2, %s18
      // Predicated region
      $region57: #{tpu_custom_call.1} parent=5 // pred_check
        %p432 = pneg %p431
      $region58: #{tpu_custom_call.1} parent=5 // pred_check_branch
        %434 = sbr.rel (%p432) target = $region60
      $region59: #{tpu_custom_call.1} parent=5 // pred_region
        %s435 = ssub.s32 %s18, 2
        // Predicated region
        $region61: #{tpu_custom_call.1} parent=59 // pred_check
          %p436 = pneg %p137
        $region62: #{tpu_custom_call.1} parent=59 // pred_check_branch
          %438 = sbr.rel (%p436) target = $region64
        $region63: #{tpu_custom_call.1} parent=59 // pred_region
          %s439 = sand.u32 %s122, 1
          %s440 = scalar_lea.sflag [#allocation6], %s439
          %s441 = sand.u32 %s122, 1
          %s442 = smul.addr %s441, 24
          %s443 = scalar_lea.vmem [#allocation10], %s442
          %444 = dma.done %s440, 384
        $region64: #{tpu_custom_call.1} parent=59 // pred_fallthru
          _
      $region60: #{tpu_custom_call.1} parent=5 // pred_fallthru
        _
    $region6: #{tpu_custom_call.1} parent=1 // loop_footer
      %s22 = sadd.s32 1, %s18
    $region7: #{tpu_custom_call.1} parent=1 // loop_footer_branch
      %17 = sbr.rel target = $region3
    $region8: #{tpu_custom_call.1} parent=1 // loop_exit
      _
    %445 = vsyncpa [#allocation5], 1
    %s446 = scalar_lea.sflag [#allocation5], 1
    %447 = vsyncpa %s446, 1
    %448 = vsyncpa [#allocation8], 1
    %s449 = scalar_lea.sflag [#allocation8], 1
    %450 = vsyncpa %s449, 1
    %451 = vsyncpa [#allocation6], 1
    %s452 = scalar_lea.sflag [#allocation6], 1
    %453 = vsyncpa %s452, 1

</llo_original>
